<compile_context>
chip_gen: v5e
topology: v5e:2x2
jax: 0.10.0
libtpu: 0.0.40
codegen_flags: <defaults>
</compile_context>

<pallas_src>
import jax
import jax.numpy as jnp
from jax.experimental import pallas as pl
from jax.experimental.pallas import tpu as pltpu


def _critic_kernel(xT_ref, w1_ref, b1_ref, w2_ref, b2_ref, w3_ref, b3_ref, o_ref):
    xT = xT_ref[...]                                    # (2, Bn) f32, batch on lanes
    w1 = w1_ref[...]                                    # (64, 2) f32

    # ---- Layer 1: Linear(2, 64) + ReLU, on the VPU (K=2 -> two broadcast FMAs, f32) ----
    h1 = w1[:, 0:1] * xT[0:1, :] + w1[:, 1:2] * xT[1:2, :] + b1_ref[...]   # (64, Bn)
    h1 = jnp.maximum(h1, 0.0)

    # ---- Layer 2: Linear(64, 128) + ReLU; bf16 MXU operands, f32 accumulation ----
    h2 = jnp.dot(w2_ref[...], h1.astype(jnp.bfloat16),
                 preferred_element_type=jnp.float32) + b2_ref[...]          # (128, Bn)
    h2 = jnp.maximum(h2, 0.0)

    # ---- Layer 3: Linear(128, 1); bf16 dot, lane-dense (1, Bn) output row ----
    out = jnp.dot(w3_ref[...], h2.astype(jnp.bfloat16),
                  preferred_element_type=jnp.float32) + b3_ref[0]           # (1, Bn)
    o_ref[...] = out.astype(o_ref.dtype)


def _round_up(v, m):
    return ((v + m - 1) // m) * m


def _vmem_cap_bytes():
    # Per-generation safe ceiling: leave headroom below physical VMEM
    # (v7x: 64 MiB/TC, v5e/v6e: 128 MiB).
    try:
        cap = pltpu.get_tpu_info().vmem_capacity_bytes
        return min((cap * 3) // 4, 100 * 1024 * 1024)
    except Exception:
        return 48 * 1024 * 1024


def discriminator_forward(x, params, *, block_n=None):
    """x: (N, 2) float32. Returns (N,) float32 critic scores (matches torch .squeeze())."""
    W1, b1, W2, b2, W3, b3 = params                     # PyTorch layout: W (out,in), b (out,)
    N, Din = x.shape
    assert Din == 2

    # Adaptive batch tile: one tile for small N, else a large lane-aligned tile
    # (per-grid-step pipeline overhead ~0.35 us dwarfs the ~0.1-0.3 us of compute
    # at small tiles, so bigger is better until VMEM matters).
    if block_n is None:
        block_n = min(_round_up(N, 128), 4096)
    assert block_n % 128 == 0, "batch tile must be lane-aligned (multiple of 128)"

    N_pad = _round_up(N, block_n)
    grid = (N_pad // block_n,)

    # Transposed dataflow: batch on the lane axis everywhere.
    xT = x.T                                            # (2, N)
    if N_pad > N:
        xT = jnp.pad(xT, ((0, 0), (0, N_pad - N)))      # padded columns sliced off below

    b1c = b1.reshape(64, 1)
    b2c = b2.reshape(128, 1)
    b3s = b3.reshape(1)                                 # scalar bias -> SMEM
    W2b = W2.astype(jnp.bfloat16)                       # bf16 MXU operands (f32 acc in-kernel)
    W3b = W3.astype(jnp.bfloat16)

    def full(shape):
        # tiny weight/bias operands: same full block every grid step
        return pl.BlockSpec(shape, lambda i: tuple(0 for _ in shape))

    # Rough per-step VMEM footprint: double-buffered xT/out tiles + f32 h1/h2
    # intermediates + resident weights.  Only raise the scoped limit if needed,
    # and never above the chip's safe ceiling.
    est_vmem = (2 * (2 + 1) * block_n * 4            # xT + out, double-buffered, f32
                + (64 + 128) * block_n * 4           # h1 + h2 intermediates, f32
                + (64 + 128) * block_n * 2           # bf16 copies of h1/h2 for the dots
                + 64 * 1024)                         # weights/biases + slack
    vmem_limit = None
    if est_vmem > 16 * 1024 * 1024:                  # v5e default scoped VMEM
        vmem_limit = min(est_vmem * 2, _vmem_cap_bytes())

    cost = pl.CostEstimate(
        flops=N_pad * (2 * 2 * 64 + 2 * 64 * 128 + 2 * 128 * 1),
        transcendentals=0,
        bytes_accessed=4 * (N_pad * 2 + N_pad + 64 * 2 + 64 + 128 + 1) + 2 * (128 * 64 + 128),
    )

    out_row = pl.pallas_call(
        _critic_kernel,
        out_shape=jax.ShapeDtypeStruct((1, N_pad), jnp.float32),
        grid_spec=pltpu.PrefetchScalarGridSpec(
            num_scalar_prefetch=0,
            grid=grid,
            in_specs=[
                pl.BlockSpec((2, block_n), lambda i: (0, i)),       # xT tile, batch on lanes
                full(W1.shape),                                     # (64, 2)   f32
                full(b1c.shape),                                    # (64, 1)   f32
                full(W2b.shape),                                    # (128, 64) bf16
                full(b2c.shape),                                    # (128, 1)  f32
                full(W3b.shape),                                    # (1, 128)  bf16
                pl.BlockSpec(memory_space=pltpu.MemorySpace.SMEM),  # scalar b3
            ],
            out_specs=pl.BlockSpec((1, block_n), lambda i: (0, i)),  # lane-dense output
        ),
        compiler_params=pltpu.CompilerParams(
            dimension_semantics=("parallel",),   # batch tiles independent -> shardable across TCs
            vmem_limit_bytes=vmem_limit,
        ),
        cost_estimate=cost,
    )(xT, W1, b1c, W2b, b2c, W3b, b3s)

    # (1, N_pad) -> (N,)  (drop padded columns; torch's .squeeze())
    return out_row[0, :N]


def init_params(key):
    """Deterministic synthetic init matching nn.Linear shapes: W (out,in), b (out,)."""
    def linear(key, fan_in, fan_out):
        kw, kb = jax.random.split(key)
        bound = 1.0 / jnp.sqrt(fan_in)
        w = jax.random.uniform(kw, (fan_out, fan_in), jnp.float32, -bound, bound)
        b = jax.random.uniform(kb, (fan_out,), jnp.float32, -bound, bound)
        return w, b

    k1, k2, k3 = jax.random.split(key, 3)
    W1, b1 = linear(k1, 2, 64)
    W2, b2 = linear(k2, 64, 128)
    W3, b3 = linear(k3, 128, 1)
    return (W1, b1, W2, b2, W3, b3)


def _reference(x, params):
    W1, b1, W2, b2, W3, b3 = params
    h1 = jnp.maximum(x @ W1.T + b1, 0.0)
    h2 = jnp.maximum(h1 @ W2.T + b2, 0.0)
    return jnp.squeeze(h2 @ W3.T + b3, axis=-1)


if __name__ == "__main__":
    key = jax.random.PRNGKey(0)
    kp, kx1, kx2 = jax.random.split(key, 3)
    params = init_params(kp)

    # Small, ragged batch (exercises padding + single adaptive tile).
    N1 = 1000
    x1 = jax.random.normal(kx1, (N1, 2), jnp.float32)
    out1 = jax.block_until_ready(discriminator_forward(x1, params))
    ref1 = _reference(x1, params)
    assert out1.shape == (N1,)
    assert jnp.allclose(out1, ref1, atol=3e-2, rtol=3e-2)  # bf16 MXU operands -> loosened tol

    # Larger batch with an explicit multi-tile grid (2 tiles -> both v7x TCs).
    N2 = 4096
    x2 = jax.random.normal(kx2, (N2, 2), jnp.float32)
    out2 = jax.block_until_ready(discriminator_forward(x2, params, block_n=2048))
    ref2 = _reference(x2, params)
    assert out2.shape == (N2,)
    assert jnp.allclose(out2, ref2, atol=3e-2, rtol=3e-2)

    print("KERNEL_OK")
</pallas_src>

<mosaic_0001>
module attributes {stable_mosaic.version = 11 : i64} {
  func.func @_critic_kernel(%arg0: i32, %arg1: memref<2x1024xf32, #tpu.memory_space<vmem>>, %arg2: memref<64x2xf32, #tpu.memory_space<vmem>>, %arg3: memref<64x1xf32, #tpu.memory_space<vmem>>, %arg4: memref<128x64xbf16, #tpu.memory_space<vmem>>, %arg5: memref<128x1xf32, #tpu.memory_space<vmem>>, %arg6: memref<1x128xbf16, #tpu.memory_space<vmem>>, %arg7: memref<1xf32, #tpu.memory_space<smem>>, %arg8: memref<1x1024xf32, #tpu.memory_space<vmem>>) attributes {dimension_semantics = [#tpu.dimension_semantics<parallel>], iteration_bounds = array<i64: 1>, scalar_prefetch = 0 : i64, scratch_operands = 0 : i64, tpu.core_type = #tpu.core_type<tc>, window_params = [{transform_indices = @transform_0, window_bounds = array<i64: 2, 1024>}, {pipeline_mode = #tpu.pipeline_mode<synchronous>, transform_indices = @transform_1, window_bounds = array<i64: 64, 2>}, {pipeline_mode = #tpu.pipeline_mode<synchronous>, transform_indices = @transform_2, window_bounds = array<i64: 64, 1>}, {pipeline_mode = #tpu.pipeline_mode<synchronous>, transform_indices = @transform_3, window_bounds = array<i64: 128, 64>}, {pipeline_mode = #tpu.pipeline_mode<synchronous>, transform_indices = @transform_4, window_bounds = array<i64: 128, 1>}, {pipeline_mode = #tpu.pipeline_mode<synchronous>, transform_indices = @transform_5, window_bounds = array<i64: 1, 128>}, {transform_indices = @transform_6, window_bounds = array<i64: 1>}, {transform_indices = @transform_7, window_bounds = array<i64: 1, 1024>}]} {
    %c0 = arith.constant 0 : index
    %c0_0 = arith.constant 0 : index
    %0 = vector.load %arg1[%c0, %c0_0] : memref<2x1024xf32, #tpu.memory_space<vmem>>, vector<2x1024xf32>
    %c0_1 = arith.constant 0 : index
    %c0_2 = arith.constant 0 : index
    %1 = vector.load %arg2[%c0_1, %c0_2] : memref<64x2xf32, #tpu.memory_space<vmem>>, vector<64x2xf32>
    %2 = vector.extract_strided_slice %1 {offsets = [0, 0], sizes = [64, 1], strides = [1, 1]} : vector<64x2xf32> to vector<64x1xf32>
    %3 = vector.extract_strided_slice %0 {offsets = [0, 0], sizes = [1, 1024], strides = [1, 1]} : vector<2x1024xf32> to vector<1x1024xf32>
    %4 = vector.broadcast %2 : vector<64x1xf32> to vector<64x1024xf32>
    %5 = vector.broadcast %3 : vector<1x1024xf32> to vector<64x1024xf32>
    %6 = arith.mulf %4, %5 : vector<64x1024xf32>
    %7 = vector.extract_strided_slice %1 {offsets = [0, 1], sizes = [64, 1], strides = [1, 1]} : vector<64x2xf32> to vector<64x1xf32>
    %8 = vector.extract_strided_slice %0 {offsets = [1, 0], sizes = [1, 1024], strides = [1, 1]} : vector<2x1024xf32> to vector<1x1024xf32>
    %9 = vector.broadcast %7 : vector<64x1xf32> to vector<64x1024xf32>
    %10 = vector.broadcast %8 : vector<1x1024xf32> to vector<64x1024xf32>
    %11 = arith.mulf %9, %10 : vector<64x1024xf32>
    %12 = arith.addf %6, %11 : vector<64x1024xf32>
    %c0_3 = arith.constant 0 : index
    %c0_4 = arith.constant 0 : index
    %13 = vector.load %arg3[%c0_3, %c0_4] : memref<64x1xf32, #tpu.memory_space<vmem>>, vector<64x1xf32>
    %14 = vector.broadcast %13 : vector<64x1xf32> to vector<64x1024xf32>
    %15 = arith.addf %12, %14 : vector<64x1024xf32>
    %cst = arith.constant 0.000000e+00 : f32
    %16 = vector.broadcast %cst : f32 to vector<64x1024xf32>
    %17 = arith.maximumf %15, %16 : vector<64x1024xf32>
    %c0_5 = arith.constant 0 : index
    %c0_6 = arith.constant 0 : index
    %18 = vector.load %arg4[%c0_5, %c0_6] : memref<128x64xbf16, #tpu.memory_space<vmem>>, vector<128x64xbf16>
    %19 = arith.truncf %17 : vector<64x1024xf32> to vector<64x1024xbf16>
    %cst_7 = arith.constant dense<0.000000e+00> : vector<128x1024xf32>
    %20 = tpu.matmul %18, %19, %cst_7 {dimension_numbers = #tpu.dot_dimension_numbers<[1], [0], [0], [1], [0, 0, 1, 1], [], []>} : vector<128x64xbf16>, vector<64x1024xbf16>, vector<128x1024xf32> -> vector<128x1024xf32>
    %c0_8 = arith.constant 0 : index
    %c0_9 = arith.constant 0 : index
    %21 = vector.load %arg5[%c0_8, %c0_9] : memref<128x1xf32, #tpu.memory_space<vmem>>, vector<128x1xf32>
    %22 = vector.broadcast %21 : vector<128x1xf32> to vector<128x1024xf32>
    %23 = arith.addf %20, %22 : vector<128x1024xf32>
    %cst_10 = arith.constant 0.000000e+00 : f32
    %24 = vector.broadcast %cst_10 : f32 to vector<128x1024xf32>
    %25 = arith.maximumf %23, %24 : vector<128x1024xf32>
    %c0_11 = arith.constant 0 : index
    %c0_12 = arith.constant 0 : index
    %26 = vector.load %arg6[%c0_11, %c0_12] : memref<1x128xbf16, #tpu.memory_space<vmem>>, vector<1x128xbf16>
    %27 = arith.truncf %25 : vector<128x1024xf32> to vector<128x1024xbf16>
    %cst_13 = arith.constant dense<0.000000e+00> : vector<1x1024xf32>
    %28 = tpu.matmul %26, %27, %cst_13 {dimension_numbers = #tpu.dot_dimension_numbers<[1], [0], [0], [1], [0, 0, 1, 1], [], []>} : vector<1x128xbf16>, vector<128x1024xbf16>, vector<1x1024xf32> -> vector<1x1024xf32>
    %c0_14 = arith.constant 0 : index
    %29 = memref.load %arg7[%c0_14] : memref<1xf32, #tpu.memory_space<smem>>
    %30 = vector.broadcast %29 : f32 to vector<1x1024xf32>
    %31 = arith.addf %28, %30 : vector<1x1024xf32>
    %c0_15 = arith.constant 0 : index
    %c0_16 = arith.constant 0 : index
    %32 = vector.load %arg8[%c0_15, %c0_16] : memref<1x1024xf32, #tpu.memory_space<vmem>>, vector<1x1024xf32>
    tpu.vector_store %arg8[%c0_15, %c0_16], %31 {strides = array<i32>} : memref<1x1024xf32, #tpu.memory_space<vmem>>, vector<1x1024xf32>,
    return
  }
  func.func @transform_0(%arg0: i32) -> (i32, i32) {
    %c0_i32 = arith.constant 0 : i32
    %c0_i32_0 = arith.constant 0 : i32
    return %c0_i32, %arg0 : i32, i32
  }
  func.func @transform_1(%arg0: i32) -> (i32, i32) {
    %c0_i32 = arith.constant 0 : i32
    %c0_i32_0 = arith.constant 0 : i32
    %c0_i32_1 = arith.constant 0 : i32
    return %c0_i32, %c0_i32_0 : i32, i32
  }
  func.func @transform_2(%arg0: i32) -> (i32, i32) {
    %c0_i32 = arith.constant 0 : i32
    %c0_i32_0 = arith.constant 0 : i32
    %c0_i32_1 = arith.constant 0 : i32
    return %c0_i32, %c0_i32_0 : i32, i32
  }
  func.func @transform_3(%arg0: i32) -> (i32, i32) {
    %c0_i32 = arith.constant 0 : i32
    %c0_i32_0 = arith.constant 0 : i32
    %c0_i32_1 = arith.constant 0 : i32
    return %c0_i32, %c0_i32_0 : i32, i32
  }
  func.func @transform_4(%arg0: i32) -> (i32, i32) {
    %c0_i32 = arith.constant 0 : i32
    %c0_i32_0 = arith.constant 0 : i32
    %c0_i32_1 = arith.constant 0 : i32
    return %c0_i32, %c0_i32_0 : i32, i32
  }
  func.func @transform_5(%arg0: i32) -> (i32, i32) {
    %c0_i32 = arith.constant 0 : i32
    %c0_i32_0 = arith.constant 0 : i32
    %c0_i32_1 = arith.constant 0 : i32
    return %c0_i32, %c0_i32_0 : i32, i32
  }
  func.func @transform_6(%arg0: i32) -> i32 {
    %c0_i32 = arith.constant 0 : i32
    %c0_i32_0 = arith.constant 0 : i32
    return %c0_i32 : i32
  }
  func.func @transform_7(%arg0: i32) -> (i32, i32) {
    %c0_i32 = arith.constant 0 : i32
    %c0_i32_0 = arith.constant 0 : i32
    return %c0_i32, %arg0 : i32, i32
  }
}

</mosaic_0001>

<llo_original>
// kernel: tpu_custom_call.1
$region0: #{tpu_custom_call.1}
  #allocation0 [shape = 'u32[]', space=smem, size = 0x4, offset = 0x4, fixed_abs, tag = 'smem constant byte address 0x4 - core index']
  #allocation1 [shape = 'u32[72,128]{1,0:T(1,128)}', space=vmem, size = 0x9000, scoped, tag = 'internal scratch']
  #allocation2 [shape = 'f32[1]{0:T(128)S(6)}', space=smem, size = 0x200, scoped, tag = 'scoped memory for tpu_custom_call.1']
  %s0 = inlined_call_operand.vmem [shape: f32[2,1024], index: 0, kind: input, shape index: {}]
  %s1 = inlined_call_operand.vmem [shape: f32[64,2], index: 1, kind: input, shape index: {}]
  %s2 = inlined_call_operand.vmem [shape: f32[64,1], index: 2, kind: input, shape index: {}]
  %s3 = inlined_call_operand.vmem [shape: bf16[128,64], index: 3, kind: input, shape index: {}]
  %s4 = inlined_call_operand.vmem [shape: f32[128,1], index: 4, kind: input, shape index: {}]
  %s5 = inlined_call_operand.vmem [shape: bf16[1,128], index: 5, kind: input, shape index: {}]
  %s6 = inlined_call_operand.<no memory space> [shape: f32[1], index: 6, kind: input, shape index: {}]
  %s7 = inlined_call_operand.hbm [shape: f32[1,1024], index: 7, kind: output, shape index: {}]
  %s8 = sld [smem:[#allocation0]]
  $region38: #{tpu_custom_call.1} parent=0
    _
  %s10 = ssub.s32 1, %s8
  %s11 = scalar_select 0, %s10, %s8
  %12 = sst [smem:[#allocation2]] %s6
  $region1: #{tpu_custom_call.1} parent=0
    #allocation3 [shape = 'u8[4096]{0}', space=vmem, size = 0x1000, scoped, tag = 'output window, operand 0, single buffered']
    #allocation4 [shape = 's32[1]{0}', space=sflag, size = 0x4, scoped, tag = 'scoped memory for tpu_custom_call.1']
    %13 = vsyncpa [#allocation4], 0
    // Predicated region
    $region2: #{tpu_custom_call.1} parent=1 // pred_check
      _
    $region3: #{tpu_custom_call.1} parent=1 // pred_check_branch
      %15 = sbr.rel (0) target = $region5
    $region4: #{tpu_custom_call.1} parent=1 // pred_region
      _
    $region5: #{tpu_custom_call.1} parent=1 // pred_fallthru
      _
    // Predicated region
    $region6: #{tpu_custom_call.1} parent=1 // pred_check
      _
    $region7: #{tpu_custom_call.1} parent=1 // pred_check_branch
      %17 = sbr.rel (0) target = $region9
    $region8: #{tpu_custom_call.1} parent=1 // pred_region
      _
    $region9: #{tpu_custom_call.1} parent=1 // pred_fallthru
      _
    // Predicated region
    $region10: #{tpu_custom_call.1} parent=1 // pred_check
      _
    $region11: #{tpu_custom_call.1} parent=1 // pred_check_branch
      %19 = sbr.rel (0) target = $region13
    $region12: #{tpu_custom_call.1} parent=1 // pred_region
      _
    $region13: #{tpu_custom_call.1} parent=1 // pred_fallthru
      _
    // Predicated region
    $region14: #{tpu_custom_call.1} parent=1 // pred_check
      _
    $region15: #{tpu_custom_call.1} parent=1 // pred_check_branch
      %21 = sbr.rel (0) target = $region17
    $region16: #{tpu_custom_call.1} parent=1 // pred_region
      _
    $region17: #{tpu_custom_call.1} parent=1 // pred_fallthru
      _
    // Predicated region
    $region18: #{tpu_custom_call.1} parent=1 // pred_check
      _
    $region19: #{tpu_custom_call.1} parent=1 // pred_check_branch
      %23 = sbr.rel (0) target = $region21
    $region20: #{tpu_custom_call.1} parent=1 // pred_region
      _
    $region21: #{tpu_custom_call.1} parent=1 // pred_fallthru
      _
    // Predicated region
    $region22: #{tpu_custom_call.1} parent=1 // pred_check
      _
    $region23: #{tpu_custom_call.1} parent=1 // pred_check_branch
      %25 = sbr.rel (0) target = $region25
    $region24: #{tpu_custom_call.1} parent=1 // pred_region
      _
    $region25: #{tpu_custom_call.1} parent=1 // pred_fallthru
      _
    // Predicated region
    $region26: #{tpu_custom_call.1} parent=1 // pred_check
      _
    $region27: #{tpu_custom_call.1} parent=1 // pred_check_branch
      %27 = sbr.rel (0) target = $region29
    $region28: #{tpu_custom_call.1} parent=1 // pred_region
      _
    $region29: #{tpu_custom_call.1} parent=1 // pred_fallthru
      _
    %v29 = vld [vmem:[%s0] sm:$0xff]
    %v30 = vld [vmem:[%s0 + $0x8] sm:$0xff]
    %v31 = vld [vmem:[%s1] sm:$0xff]
    %v32 = vld [vmem:[%s1 + $0x8] sm:$0xff]
    %v33 = vld [vmem:[%s1 + $0x10] sm:$0xff]
    %v34 = vld [vmem:[%s1 + $0x18] sm:$0xff]
    %v35 = vld [vmem:[%s1 + $0x20] sm:$0xff]
    %v36 = vld [vmem:[%s1 + $0x28] sm:$0xff]
    %v37 = vld [vmem:[%s1 + $0x30] sm:$0xff]
    %v38 = vld [vmem:[%s1 + $0x38] sm:$0xff]
    %40 = vset.pattern.permute.xlu0 0
    %41 = vperm.xlu0 %40, %v31
    %v42 = vpop.permute.xlu0 %41
    %45 = vset.pattern.permute.xlu0 0
    %46 = vperm.xlu0 %45, %v32
    %v47 = vpop.permute.xlu0 %46
    %50 = vset.pattern.permute.xlu0 0
    %51 = vperm.xlu0 %50, %v33
    %v52 = vpop.permute.xlu0 %51
    %55 = vset.pattern.permute.xlu0 0
    %56 = vperm.xlu0 %55, %v34
    %v57 = vpop.permute.xlu0 %56
    %60 = vset.pattern.permute.xlu0 0
    %61 = vperm.xlu0 %60, %v35
    %v62 = vpop.permute.xlu0 %61
    %65 = vset.pattern.permute.xlu0 0
    %66 = vperm.xlu0 %65, %v36
    %v67 = vpop.permute.xlu0 %66
    %70 = vset.pattern.permute.xlu0 0
    %71 = vperm.xlu0 %70, %v37
    %v72 = vpop.permute.xlu0 %71
    %75 = vset.pattern.permute.xlu0 0
    %76 = vperm.xlu0 %75, %v38
    %v77 = vpop.permute.xlu0 %76
    %v81 = vperm.slane %v29, 0
    %v82 = vperm.slane %v29, 2
    %v83 = vperm.slane %v29, 4
    %v84 = vperm.slane %v29, 6
    %v85 = vperm.slane %v30, 0
    %v86 = vperm.slane %v30, 2
    %v87 = vperm.slane %v30, 4
    %v88 = vperm.slane %v30, 6
    %v97 = vperm.slane %v81, 0
    %v98 = vperm.slane %v82, 0
    %v99 = vperm.slane %v83, 0
    %v100 = vperm.slane %v84, 0
    %v101 = vperm.slane %v85, 0
    %v102 = vperm.slane %v86, 0
    %v103 = vperm.slane %v87, 0
    %v104 = vperm.slane %v88, 0
    %v105 = vmul.f32 %v42, %v97
    %v106 = vmul.f32 %v42, %v98
    %v107 = vmul.f32 %v42, %v99
    %v108 = vmul.f32 %v42, %v100
    %v109 = vmul.f32 %v42, %v101
    %v110 = vmul.f32 %v42, %v102
    %v111 = vmul.f32 %v42, %v103
    %v112 = vmul.f32 %v42, %v104
    %v113 = vmul.f32 %v47, %v97
    %v114 = vmul.f32 %v47, %v98
    %v115 = vmul.f32 %v47, %v99
    %v116 = vmul.f32 %v47, %v100
    %v117 = vmul.f32 %v47, %v101
    %v118 = vmul.f32 %v47, %v102
    %v119 = vmul.f32 %v47, %v103
    %v120 = vmul.f32 %v47, %v104
    %v121 = vmul.f32 %v52, %v97
    %v122 = vmul.f32 %v52, %v98
    %v123 = vmul.f32 %v52, %v99
    %v124 = vmul.f32 %v52, %v100
    %v125 = vmul.f32 %v52, %v101
    %v126 = vmul.f32 %v52, %v102
    %v127 = vmul.f32 %v52, %v103
    %v128 = vmul.f32 %v52, %v104
    %v129 = vmul.f32 %v57, %v97
    %v130 = vmul.f32 %v57, %v98
    %v131 = vmul.f32 %v57, %v99
    %v132 = vmul.f32 %v57, %v100
    %v133 = vmul.f32 %v57, %v101
    %v134 = vmul.f32 %v57, %v102
    %v135 = vmul.f32 %v57, %v103
    %v136 = vmul.f32 %v57, %v104
    %v137 = vmul.f32 %v62, %v97
    %v138 = vmul.f32 %v62, %v98
    %v139 = vmul.f32 %v62, %v99
    %v140 = vmul.f32 %v62, %v100
    %v141 = vmul.f32 %v62, %v101
    %v142 = vmul.f32 %v62, %v102
    %v143 = vmul.f32 %v62, %v103
    %v144 = vmul.f32 %v62, %v104
    %v145 = vmul.f32 %v67, %v97
    %v146 = vmul.f32 %v67, %v98
    %v147 = vmul.f32 %v67, %v99
    %v148 = vmul.f32 %v67, %v100
    %v149 = vmul.f32 %v67, %v101
    %v150 = vmul.f32 %v67, %v102
    %v151 = vmul.f32 %v67, %v103
    %v152 = vmul.f32 %v67, %v104
    %v153 = vmul.f32 %v72, %v97
    %v154 = vmul.f32 %v72, %v98
    %v155 = vmul.f32 %v72, %v99
    %v156 = vmul.f32 %v72, %v100
    %v157 = vmul.f32 %v72, %v101
    %v158 = vmul.f32 %v72, %v102
    %v159 = vmul.f32 %v72, %v103
    %v160 = vmul.f32 %v72, %v104
    %v161 = vmul.f32 %v77, %v97
    %v162 = vmul.f32 %v77, %v98
    %v163 = vmul.f32 %v77, %v99
    %v164 = vmul.f32 %v77, %v100
    %v165 = vmul.f32 %v77, %v101
    %v166 = vmul.f32 %v77, %v102
    %v167 = vmul.f32 %v77, %v103
    %v168 = vmul.f32 %v77, %v104
    %169 = vset.pattern.permute.xlu0 1
    %170 = vperm.xlu0 %169, %v31
    %v171 = vpop.permute.xlu0 %170
    %173 = vset.pattern.permute.xlu0 1
    %174 = vperm.xlu0 %173, %v32
    %v175 = vpop.permute.xlu0 %174
    %177 = vset.pattern.permute.xlu0 1
    %178 = vperm.xlu0 %177, %v33
    %v179 = vpop.permute.xlu0 %178
    %181 = vset.pattern.permute.xlu0 1
    %182 = vperm.xlu0 %181, %v34
    %v183 = vpop.permute.xlu0 %182
    %185 = vset.pattern.permute.xlu0 1
    %186 = vperm.xlu0 %185, %v35
    %v187 = vpop.permute.xlu0 %186
    %189 = vset.pattern.permute.xlu0 1
    %190 = vperm.xlu0 %189, %v36
    %v191 = vpop.permute.xlu0 %190
    %193 = vset.pattern.permute.xlu0 1
    %194 = vperm.xlu0 %193, %v37
    %v195 = vpop.permute.xlu0 %194
    %197 = vset.pattern.permute.xlu0 1
    %198 = vperm.xlu0 %197, %v38
    %v199 = vpop.permute.xlu0 %198
    %v201 = vperm.slane %v29, 1
    %v202 = vperm.slane %v29, 3
    %v203 = vperm.slane %v29, 5
    %v204 = vperm.slane %v29, 7
    %v205 = vperm.slane %v30, 1
    %v206 = vperm.slane %v30, 3
    %v207 = vperm.slane %v30, 5
    %v208 = vperm.slane %v30, 7
    %v217 = vperm.slane %v201, 1
    %v218 = vperm.slane %v202, 1
    %v219 = vperm.slane %v203, 1
    %v220 = vperm.slane %v204, 1
    %v221 = vperm.slane %v205, 1
    %v222 = vperm.slane %v206, 1
    %v223 = vperm.slane %v207, 1
    %v224 = vperm.slane %v208, 1
    %v225 = vmul.f32 %v171, %v217
    %v226 = vmul.f32 %v171, %v218
    %v227 = vmul.f32 %v171, %v219
    %v228 = vmul.f32 %v171, %v220
    %v229 = vmul.f32 %v171, %v221
    %v230 = vmul.f32 %v171, %v222
    %v231 = vmul.f32 %v171, %v223
    %v232 = vmul.f32 %v171, %v224
    %v233 = vmul.f32 %v175, %v217
    %v234 = vmul.f32 %v175, %v218
    %v235 = vmul.f32 %v175, %v219
    %v236 = vmul.f32 %v175, %v220
    %v237 = vmul.f32 %v175, %v221
    %v238 = vmul.f32 %v175, %v222
    %v239 = vmul.f32 %v175, %v223
    %v240 = vmul.f32 %v175, %v224
    %v241 = vmul.f32 %v179, %v217
    %v242 = vmul.f32 %v179, %v218
    %v243 = vmul.f32 %v179, %v219
    %v244 = vmul.f32 %v179, %v220
    %v245 = vmul.f32 %v179, %v221
    %v246 = vmul.f32 %v179, %v222
    %v247 = vmul.f32 %v179, %v223
    %v248 = vmul.f32 %v179, %v224
    %v249 = vmul.f32 %v183, %v217
    %v250 = vmul.f32 %v183, %v218
    %v251 = vmul.f32 %v183, %v219
    %v252 = vmul.f32 %v183, %v220
    %v253 = vmul.f32 %v183, %v221
    %v254 = vmul.f32 %v183, %v222
    %v255 = vmul.f32 %v183, %v223
    %v256 = vmul.f32 %v183, %v224
    %v257 = vmul.f32 %v187, %v217
    %v258 = vmul.f32 %v187, %v218
    %v259 = vmul.f32 %v187, %v219
    %v260 = vmul.f32 %v187, %v220
    %v261 = vmul.f32 %v187, %v221
    %v262 = vmul.f32 %v187, %v222
    %v263 = vmul.f32 %v187, %v223
    %v264 = vmul.f32 %v187, %v224
    %v265 = vmul.f32 %v191, %v217
    %v266 = vmul.f32 %v191, %v218
    %v267 = vmul.f32 %v191, %v219
    %v268 = vmul.f32 %v191, %v220
    %v269 = vmul.f32 %v191, %v221
    %v270 = vmul.f32 %v191, %v222
    %v271 = vmul.f32 %v191, %v223
    %v272 = vmul.f32 %v191, %v224
    %v273 = vmul.f32 %v195, %v217
    %v274 = vmul.f32 %v195, %v218
    %v275 = vmul.f32 %v195, %v219
    %v276 = vmul.f32 %v195, %v220
    %v277 = vmul.f32 %v195, %v221
    %v278 = vmul.f32 %v195, %v222
    %v279 = vmul.f32 %v195, %v223
    %v280 = vmul.f32 %v195, %v224
    %v281 = vmul.f32 %v199, %v217
    %v282 = vmul.f32 %v199, %v218
    %v283 = vmul.f32 %v199, %v219
    %v284 = vmul.f32 %v199, %v220
    %v285 = vmul.f32 %v199, %v221
    %v286 = vmul.f32 %v199, %v222
    %v287 = vmul.f32 %v199, %v223
    %v288 = vmul.f32 %v199, %v224
    %v289 = vadd.f32 %v105, %v225
    %v290 = vadd.f32 %v106, %v226
    %v291 = vadd.f32 %v107, %v227
    %v292 = vadd.f32 %v108, %v228
    %v293 = vadd.f32 %v109, %v229
    %v294 = vadd.f32 %v110, %v230
    %v295 = vadd.f32 %v111, %v231
    %v296 = vadd.f32 %v112, %v232
    %v297 = vadd.f32 %v113, %v233
    %v298 = vadd.f32 %v114, %v234
    %v299 = vadd.f32 %v115, %v235
    %v300 = vadd.f32 %v116, %v236
    %v301 = vadd.f32 %v117, %v237
    %v302 = vadd.f32 %v118, %v238
    %v303 = vadd.f32 %v119, %v239
    %v304 = vadd.f32 %v120, %v240
    %v305 = vadd.f32 %v121, %v241
    %v306 = vadd.f32 %v122, %v242
    %v307 = vadd.f32 %v123, %v243
    %v308 = vadd.f32 %v124, %v244
    %v309 = vadd.f32 %v125, %v245
    %v310 = vadd.f32 %v126, %v246
    %v311 = vadd.f32 %v127, %v247
    %v312 = vadd.f32 %v128, %v248
    %v313 = vadd.f32 %v129, %v249
    %v314 = vadd.f32 %v130, %v250
    %v315 = vadd.f32 %v131, %v251
    %v316 = vadd.f32 %v132, %v252
    %v317 = vadd.f32 %v133, %v253
    %v318 = vadd.f32 %v134, %v254
    %v319 = vadd.f32 %v135, %v255
    %v320 = vadd.f32 %v136, %v256
    %v321 = vadd.f32 %v137, %v257
    %v322 = vadd.f32 %v138, %v258
    %v323 = vadd.f32 %v139, %v259
    %v324 = vadd.f32 %v140, %v260
    %v325 = vadd.f32 %v141, %v261
    %v326 = vadd.f32 %v142, %v262
    %v327 = vadd.f32 %v143, %v263
    %v328 = vadd.f32 %v144, %v264
    %v329 = vadd.f32 %v145, %v265
    %v330 = vadd.f32 %v146, %v266
    %v331 = vadd.f32 %v147, %v267
    %v332 = vadd.f32 %v148, %v268
    %v333 = vadd.f32 %v149, %v269
    %v334 = vadd.f32 %v150, %v270
    %v335 = vadd.f32 %v151, %v271
    %v336 = vadd.f32 %v152, %v272
    %v337 = vadd.f32 %v153, %v273
    %v338 = vadd.f32 %v154, %v274
    %v339 = vadd.f32 %v155, %v275
    %v340 = vadd.f32 %v156, %v276
    %v341 = vadd.f32 %v157, %v277
    %v342 = vadd.f32 %v158, %v278
    %v343 = vadd.f32 %v159, %v279
    %v344 = vadd.f32 %v160, %v280
    %v345 = vadd.f32 %v161, %v281
    %v346 = vadd.f32 %v162, %v282
    %v347 = vadd.f32 %v163, %v283
    %v348 = vadd.f32 %v164, %v284
    %v349 = vadd.f32 %v165, %v285
    %v350 = vadd.f32 %v166, %v286
    %v351 = vadd.f32 %v167, %v287
    %v352 = vadd.f32 %v168, %v288
    %v353 = vld [vmem:[%s2] sm:$0xff]
    %v354 = vld [vmem:[%s2 + $0x8] sm:$0xff]
    %v355 = vld [vmem:[%s2 + $0x10] sm:$0xff]
    %v356 = vld [vmem:[%s2 + $0x18] sm:$0xff]
    %v357 = vld [vmem:[%s2 + $0x20] sm:$0xff]
    %v358 = vld [vmem:[%s2 + $0x28] sm:$0xff]
    %v359 = vld [vmem:[%s2 + $0x30] sm:$0xff]
    %v360 = vld [vmem:[%s2 + $0x38] sm:$0xff]
    %362 = vset.pattern.permute.xlu0 0
    %363 = vperm.xlu0 %362, %v353
    %v364 = vpop.permute.xlu0 %363
    %367 = vset.pattern.permute.xlu0 0
    %368 = vperm.xlu0 %367, %v354
    %v369 = vpop.permute.xlu0 %368
    %372 = vset.pattern.permute.xlu0 0
    %373 = vperm.xlu0 %372, %v355
    %v374 = vpop.permute.xlu0 %373
    %377 = vset.pattern.permute.xlu0 0
    %378 = vperm.xlu0 %377, %v356
    %v379 = vpop.permute.xlu0 %378
    %382 = vset.pattern.permute.xlu0 0
    %383 = vperm.xlu0 %382, %v357
    %v384 = vpop.permute.xlu0 %383
    %387 = vset.pattern.permute.xlu0 0
    %388 = vperm.xlu0 %387, %v358
    %v389 = vpop.permute.xlu0 %388
    %392 = vset.pattern.permute.xlu0 0
    %393 = vperm.xlu0 %392, %v359
    %v394 = vpop.permute.xlu0 %393
    %397 = vset.pattern.permute.xlu0 0
    %398 = vperm.xlu0 %397, %v360
    %v399 = vpop.permute.xlu0 %398
    %v401 = vadd.f32 %v289, %v364
    %v402 = vadd.f32 %v290, %v364
    %v403 = vadd.f32 %v291, %v364
    %v404 = vadd.f32 %v292, %v364
    %v405 = vadd.f32 %v293, %v364
    %v406 = vadd.f32 %v294, %v364
    %v407 = vadd.f32 %v295, %v364
    %v408 = vadd.f32 %v296, %v364
    %v409 = vadd.f32 %v297, %v369
    %v410 = vadd.f32 %v298, %v369
    %v411 = vadd.f32 %v299, %v369
    %v412 = vadd.f32 %v300, %v369
    %v413 = vadd.f32 %v301, %v369
    %v414 = vadd.f32 %v302, %v369
    %v415 = vadd.f32 %v303, %v369
    %v416 = vadd.f32 %v304, %v369
    %v417 = vadd.f32 %v305, %v374
    %v418 = vadd.f32 %v306, %v374
    %v419 = vadd.f32 %v307, %v374
    %v420 = vadd.f32 %v308, %v374
    %v421 = vadd.f32 %v309, %v374
    %v422 = vadd.f32 %v310, %v374
    %v423 = vadd.f32 %v311, %v374
    %v424 = vadd.f32 %v312, %v374
    %v425 = vadd.f32 %v313, %v379
    %v426 = vadd.f32 %v314, %v379
    %v427 = vadd.f32 %v315, %v379
    %v428 = vadd.f32 %v316, %v379
    %v429 = vadd.f32 %v317, %v379
    %v430 = vadd.f32 %v318, %v379
    %v431 = vadd.f32 %v319, %v379
    %v432 = vadd.f32 %v320, %v379
    %v433 = vadd.f32 %v321, %v384
    %v434 = vadd.f32 %v322, %v384
    %v435 = vadd.f32 %v323, %v384
    %v436 = vadd.f32 %v324, %v384
    %v437 = vadd.f32 %v325, %v384
    %v438 = vadd.f32 %v326, %v384
    %v439 = vadd.f32 %v327, %v384
    %v440 = vadd.f32 %v328, %v384
    %v441 = vadd.f32 %v329, %v389
    %v442 = vadd.f32 %v330, %v389
    %v443 = vadd.f32 %v331, %v389
    %v444 = vadd.f32 %v332, %v389
    %v445 = vadd.f32 %v333, %v389
    %v446 = vadd.f32 %v334, %v389
    %v447 = vadd.f32 %v335, %v389
    %v448 = vadd.f32 %v336, %v389
    %v449 = vadd.f32 %v337, %v394
    %v450 = vadd.f32 %v338, %v394
    %v451 = vadd.f32 %v339, %v394
    %v452 = vadd.f32 %v340, %v394
    %v453 = vadd.f32 %v341, %v394
    %v454 = vadd.f32 %v342, %v394
    %v455 = vadd.f32 %v343, %v394
    %v456 = vadd.f32 %v344, %v394
    %v457 = vadd.f32 %v345, %v399
    %v458 = vadd.f32 %v346, %v399
    %v459 = vadd.f32 %v347, %v399
    %v460 = vadd.f32 %v348, %v399
    %v461 = vadd.f32 %v349, %v399
    %v462 = vadd.f32 %v350, %v399
    %v463 = vadd.f32 %v351, %v399
    %v464 = vadd.f32 %v352, %v399
    %v465 = vmax.f32 %v401, 0.0
    %v466 = vmax.f32 %v402, 0.0
    %v467 = vmax.f32 %v403, 0.0
    %v468 = vmax.f32 %v404, 0.0
    %v469 = vmax.f32 %v405, 0.0
    %v470 = vmax.f32 %v406, 0.0
    %v471 = vmax.f32 %v407, 0.0
    %v472 = vmax.f32 %v408, 0.0
    %v473 = vmax.f32 %v409, 0.0
    %v474 = vmax.f32 %v410, 0.0
    %v475 = vmax.f32 %v411, 0.0
    %v476 = vmax.f32 %v412, 0.0
    %v477 = vmax.f32 %v413, 0.0
    %v478 = vmax.f32 %v414, 0.0
    %v479 = vmax.f32 %v415, 0.0
    %v480 = vmax.f32 %v416, 0.0
    %v481 = vmax.f32 %v417, 0.0
    %v482 = vmax.f32 %v418, 0.0
    %v483 = vmax.f32 %v419, 0.0
    %v484 = vmax.f32 %v420, 0.0
    %v485 = vmax.f32 %v421, 0.0
    %v486 = vmax.f32 %v422, 0.0
    %v487 = vmax.f32 %v423, 0.0
    %v488 = vmax.f32 %v424, 0.0
    %v489 = vmax.f32 %v425, 0.0
    %v490 = vmax.f32 %v426, 0.0
    %v491 = vmax.f32 %v427, 0.0
    %v492 = vmax.f32 %v428, 0.0
    %v493 = vmax.f32 %v429, 0.0
    %v494 = vmax.f32 %v430, 0.0
    %v495 = vmax.f32 %v431, 0.0
    %v496 = vmax.f32 %v432, 0.0
    %v497 = vmax.f32 %v433, 0.0
    %v498 = vmax.f32 %v434, 0.0
    %v499 = vmax.f32 %v435, 0.0
    %v500 = vmax.f32 %v436, 0.0
    %v501 = vmax.f32 %v437, 0.0
    %v502 = vmax.f32 %v438, 0.0
    %v503 = vmax.f32 %v439, 0.0
    %v504 = vmax.f32 %v440, 0.0
    %v505 = vmax.f32 %v441, 0.0
    %v506 = vmax.f32 %v442, 0.0
    %v507 = vmax.f32 %v443, 0.0
    %v508 = vmax.f32 %v444, 0.0
    %v509 = vmax.f32 %v445, 0.0
    %v510 = vmax.f32 %v446, 0.0
    %v511 = vmax.f32 %v447, 0.0
    %v512 = vmax.f32 %v448, 0.0
    %v513 = vmax.f32 %v449, 0.0
    %v514 = vmax.f32 %v450, 0.0
    %v515 = vmax.f32 %v451, 0.0
    %v516 = vmax.f32 %v452, 0.0
    %v517 = vmax.f32 %v453, 0.0
    %v518 = vmax.f32 %v454, 0.0
    %v519 = vmax.f32 %v455, 0.0
    %v520 = vmax.f32 %v456, 0.0
    %v521 = vmax.f32 %v457, 0.0
    %v522 = vmax.f32 %v458, 0.0
    %v523 = vmax.f32 %v459, 0.0
    %v524 = vmax.f32 %v460, 0.0
    %v525 = vmax.f32 %v461, 0.0
    %v526 = vmax.f32 %v462, 0.0
    %v527 = vmax.f32 %v463, 0.0
    %v528 = vmax.f32 %v464, 0.0
    %v529 = vld [vmem:[%s3] sm:$0xf]
    %v530 = vld [vmem:[%s3 + $0x4] sm:$0xf]
    %v531 = vld [vmem:[%s3 + $0x8] sm:$0xf]
    %v532 = vld [vmem:[%s3 + $0xc] sm:$0xf]
    %v533 = vld [vmem:[%s3 + $0x10] sm:$0xf]
    %v534 = vld [vmem:[%s3 + $0x14] sm:$0xf]
    %v535 = vld [vmem:[%s3 + $0x18] sm:$0xf]
    %v536 = vld [vmem:[%s3 + $0x1c] sm:$0xf]
    %v537 = vld [vmem:[%s3 + $0x20] sm:$0xf]
    %v538 = vld [vmem:[%s3 + $0x24] sm:$0xf]
    %v539 = vld [vmem:[%s3 + $0x28] sm:$0xf]
    %v540 = vld [vmem:[%s3 + $0x2c] sm:$0xf]
    %v541 = vld [vmem:[%s3 + $0x30] sm:$0xf]
    %v542 = vld [vmem:[%s3 + $0x34] sm:$0xf]
    %v543 = vld [vmem:[%s3 + $0x38] sm:$0xf]
    %v544 = vld [vmem:[%s3 + $0x3c] sm:$0xf]
    %v545 = vpack.c.bf16 %v473, %v465
    %v546 = vpack.c.bf16 %v474, %v466
    %v547 = vpack.c.bf16 %v475, %v467
    %v548 = vpack.c.bf16 %v476, %v468
    %v549 = vpack.c.bf16 %v477, %v469
    %v550 = vpack.c.bf16 %v478, %v470
    %v551 = vpack.c.bf16 %v479, %v471
    %v552 = vpack.c.bf16 %v480, %v472
    %v553 = vpack.c.bf16 %v489, %v481
    %v554 = vpack.c.bf16 %v490, %v482
    %v555 = vpack.c.bf16 %v491, %v483
    %v556 = vpack.c.bf16 %v492, %v484
    %v557 = vpack.c.bf16 %v493, %v485
    %v558 = vpack.c.bf16 %v494, %v486
    %v559 = vpack.c.bf16 %v495, %v487
    %v560 = vpack.c.bf16 %v496, %v488
    %v561 = vpack.c.bf16 %v505, %v497
    %v562 = vpack.c.bf16 %v506, %v498
    %v563 = vpack.c.bf16 %v507, %v499
    %v564 = vpack.c.bf16 %v508, %v500
    %v565 = vpack.c.bf16 %v509, %v501
    %v566 = vpack.c.bf16 %v510, %v502
    %v567 = vpack.c.bf16 %v511, %v503
    %v568 = vpack.c.bf16 %v512, %v504
    %v569 = vpack.c.bf16 %v521, %v513
    %v570 = vpack.c.bf16 %v522, %v514
    %v571 = vpack.c.bf16 %v523, %v515
    %v572 = vpack.c.bf16 %v524, %v516
    %v573 = vpack.c.bf16 %v525, %v517
    %v574 = vpack.c.bf16 %v526, %v518
    %v575 = vpack.c.bf16 %v527, %v519
    %v576 = vpack.c.bf16 %v528, %v520
    %v577 = vld [vmem:[%s4] sm:$0xff]
    %v578 = vld [vmem:[%s4 + $0x8] sm:$0xff]
    %v579 = vld [vmem:[%s4 + $0x10] sm:$0xff]
    %v580 = vld [vmem:[%s4 + $0x18] sm:$0xff]
    %v581 = vld [vmem:[%s4 + $0x20] sm:$0xff]
    %v582 = vld [vmem:[%s4 + $0x28] sm:$0xff]
    %v583 = vld [vmem:[%s4 + $0x30] sm:$0xff]
    %v584 = vld [vmem:[%s4 + $0x38] sm:$0xff]
    %v585 = vld [vmem:[%s4 + $0x40] sm:$0xff]
    %v586 = vld [vmem:[%s4 + $0x48] sm:$0xff]
    %v587 = vld [vmem:[%s4 + $0x50] sm:$0xff]
    %v588 = vld [vmem:[%s4 + $0x58] sm:$0xff]
    %v589 = vld [vmem:[%s4 + $0x60] sm:$0xff]
    %v590 = vld [vmem:[%s4 + $0x68] sm:$0xff]
    %v591 = vld [vmem:[%s4 + $0x70] sm:$0xff]
    %v592 = vld [vmem:[%s4 + $0x78] sm:$0xff]
    %594 = vset.pattern.permute.xlu0 0
    %595 = vperm.xlu0 %594, %v577
    %v596 = vpop.permute.xlu0 %595
    %599 = vset.pattern.permute.xlu0 0
    %600 = vperm.xlu0 %599, %v578
    %v601 = vpop.permute.xlu0 %600
    %604 = vset.pattern.permute.xlu0 0
    %605 = vperm.xlu0 %604, %v579
    %v606 = vpop.permute.xlu0 %605
    %609 = vset.pattern.permute.xlu0 0
    %610 = vperm.xlu0 %609, %v580
    %v611 = vpop.permute.xlu0 %610
    %614 = vset.pattern.permute.xlu0 0
    %615 = vperm.xlu0 %614, %v581
    %v616 = vpop.permute.xlu0 %615
    %619 = vset.pattern.permute.xlu0 0
    %620 = vperm.xlu0 %619, %v582
    %v621 = vpop.permute.xlu0 %620
    %624 = vset.pattern.permute.xlu0 0
    %625 = vperm.xlu0 %624, %v583
    %v626 = vpop.permute.xlu0 %625
    %629 = vset.pattern.permute.xlu0 0
    %630 = vperm.xlu0 %629, %v584
    %v631 = vpop.permute.xlu0 %630
    %634 = vset.pattern.permute.xlu0 0
    %635 = vperm.xlu0 %634, %v585
    %v636 = vpop.permute.xlu0 %635
    %639 = vset.pattern.permute.xlu0 0
    %640 = vperm.xlu0 %639, %v586
    %v641 = vpop.permute.xlu0 %640
    %644 = vset.pattern.permute.xlu0 0
    %645 = vperm.xlu0 %644, %v587
    %v646 = vpop.permute.xlu0 %645
    %649 = vset.pattern.permute.xlu0 0
    %650 = vperm.xlu0 %649, %v588
    %v651 = vpop.permute.xlu0 %650
    %654 = vset.pattern.permute.xlu0 0
    %655 = vperm.xlu0 %654, %v589
    %v656 = vpop.permute.xlu0 %655
    %659 = vset.pattern.permute.xlu0 0
    %660 = vperm.xlu0 %659, %v590
    %v661 = vpop.permute.xlu0 %660
    %664 = vset.pattern.permute.xlu0 0
    %665 = vperm.xlu0 %664, %v591
    %v666 = vpop.permute.xlu0 %665
    %669 = vset.pattern.permute.xlu0 0
    %670 = vperm.xlu0 %669, %v592
    %v671 = vpop.permute.xlu0 %670
    %v689 = vunpack.c.l.b16 %v529
    %v690 = vunpack.c.l.b16 %v530
    %v691 = vunpack.c.l.b16 %v531
    %v692 = vunpack.c.l.b16 %v532
    %v693 = vunpack.c.l.b16 %v533
    %v694 = vunpack.c.l.b16 %v534
    %v695 = vunpack.c.l.b16 %v535
    %v696 = vunpack.c.l.b16 %v536
    %v697 = vunpack.c.l.b16 %v537
    %v698 = vunpack.c.l.b16 %v538
    %v699 = vunpack.c.l.b16 %v539
    %v700 = vunpack.c.l.b16 %v540
    %v701 = vunpack.c.l.b16 %v541
    %v702 = vunpack.c.l.b16 %v542
    %v703 = vunpack.c.l.b16 %v543
    %v704 = vunpack.c.l.b16 %v544
    %v705 = vpack.c.b16 %v690, %v689
    %v706 = vpack.c.b16 %v692, %v691
    %v707 = vpack.c.b16 %v694, %v693
    %v708 = vpack.c.b16 %v696, %v695
    %v709 = vpack.c.b16 %v698, %v697
    %v710 = vpack.c.b16 %v700, %v699
    %v711 = vpack.c.b16 %v702, %v701
    %v712 = vpack.c.b16 %v704, %v703
    %vm713 = vcmask 523264
    %v715 = vsel %vm713, %v705, 0
    %v718 = vsel %vm713, %v706, 0
    %v721 = vsel %vm713, %v707, 0
    %v724 = vsel %vm713, %v708, 0
    %v727 = vsel %vm713, %v709, 0
    %v730 = vsel %vm713, %v710, 0
    %v733 = vsel %vm713, %v711, 0
    %v736 = vsel %vm713, %v712, 0
    %738 = vmatpush.bf16.msra.mxu0 0
    %739 = vmatpush.bf16.msra.mxu0 0
    %740 = vmatpush.bf16.msra.mxu0 0
    %741 = vmatpush.bf16.msra.mxu0 0
    %742 = vmatpush.bf16.msra.mxu0 %v569
    %743 = vmatpush.bf16.msra.mxu0 %v561
    %744 = vmatpush.bf16.msra.mxu0 %v553
    %745 = vmatpush.bf16.msra.mxu0 %v545
    %746 = vmatmul.bf16.gmra.mxu0 %v715
    %v747 = vpop.f32.mrf.mxu0
    %v748 = vadd.f32 %v596, %v747
    %v749 = vpop.f32.mrf.mxu0
    %v750 = vadd.f32 %v601, %v749
    %751 = vmatmul.bf16.gmra.mxu0 %v718
    %v752 = vpop.f32.mrf.mxu0
    %v753 = vadd.f32 %v606, %v752
    %v754 = vpop.f32.mrf.mxu0
    %v755 = vadd.f32 %v611, %v754
    %756 = vmatmul.bf16.gmra.mxu0 %v721
    %v757 = vpop.f32.mrf.mxu0
    %v758 = vadd.f32 %v616, %v757
    %v759 = vpop.f32.mrf.mxu0
    %v760 = vadd.f32 %v621, %v759
    %761 = vmatmul.bf16.gmra.mxu0 %v724
    %v762 = vpop.f32.mrf.mxu0
    %v763 = vadd.f32 %v626, %v762
    %v764 = vpop.f32.mrf.mxu0
    %v765 = vadd.f32 %v631, %v764
    %766 = vmatmul.bf16.gmra.mxu0 %v727
    %v767 = vpop.f32.mrf.mxu0
    %v768 = vadd.f32 %v636, %v767
    %v769 = vpop.f32.mrf.mxu0
    %v770 = vadd.f32 %v641, %v769
    %771 = vmatmul.bf16.gmra.mxu0 %v730
    %v772 = vpop.f32.mrf.mxu0
    %v773 = vadd.f32 %v646, %v772
    %v774 = vpop.f32.mrf.mxu0
    %v775 = vadd.f32 %v651, %v774
    %776 = vmatmul.bf16.gmra.mxu0 %v733
    %v777 = vpop.f32.mrf.mxu0
    %v778 = vadd.f32 %v656, %v777
    %v779 = vpop.f32.mrf.mxu0
    %v780 = vadd.f32 %v661, %v779
    %781 = vmatmul.bf16.gmra.mxu0 %v736
    %v782 = vpop.f32.mrf.mxu0
    %v783 = vadd.f32 %v666, %v782
    %v784 = vpop.f32.mrf.mxu0
    %v785 = vadd.f32 %v671, %v784
    %786 = vdwg.mxu0
    %787 = vmatpush.bf16.msra.mxu0 0
    %788 = vmatpush.bf16.msra.mxu0 0
    %789 = vmatpush.bf16.msra.mxu0 0
    %790 = vmatpush.bf16.msra.mxu0 0
    %791 = vmatpush.bf16.msra.mxu0 %v570
    %792 = vmatpush.bf16.msra.mxu0 %v562
    %793 = vmatpush.bf16.msra.mxu0 %v554
    %794 = vmatpush.bf16.msra.mxu0 %v546
    %795 = vmatmul.bf16.gmra.mxu0 %v715
    %v796 = vpop.f32.mrf.mxu0
    %v797 = vadd.f32 %v596, %v796
    %v798 = vpop.f32.mrf.mxu0
    %v799 = vadd.f32 %v601, %v798
    %800 = vmatmul.bf16.gmra.mxu0 %v718
    %v801 = vpop.f32.mrf.mxu0
    %v802 = vadd.f32 %v606, %v801
    %v803 = vpop.f32.mrf.mxu0
    %v804 = vadd.f32 %v611, %v803
    %805 = vmatmul.bf16.gmra.mxu0 %v721
    %v806 = vpop.f32.mrf.mxu0
    %v807 = vadd.f32 %v616, %v806
    %v808 = vpop.f32.mrf.mxu0
    %v809 = vadd.f32 %v621, %v808
    %810 = vmatmul.bf16.gmra.mxu0 %v724
    %v811 = vpop.f32.mrf.mxu0
    %v812 = vadd.f32 %v626, %v811
    %v813 = vpop.f32.mrf.mxu0
    %v814 = vadd.f32 %v631, %v813
    %815 = vmatmul.bf16.gmra.mxu0 %v727
    %v816 = vpop.f32.mrf.mxu0
    %v817 = vadd.f32 %v636, %v816
    %v818 = vpop.f32.mrf.mxu0
    %v819 = vadd.f32 %v641, %v818
    %820 = vmatmul.bf16.gmra.mxu0 %v730
    %v821 = vpop.f32.mrf.mxu0
    %v822 = vadd.f32 %v646, %v821
    %v823 = vpop.f32.mrf.mxu0
    %v824 = vadd.f32 %v651, %v823
    %825 = vmatmul.bf16.gmra.mxu0 %v733
    %v826 = vpop.f32.mrf.mxu0
    %v827 = vadd.f32 %v656, %v826
    %v828 = vpop.f32.mrf.mxu0
    %v829 = vadd.f32 %v661, %v828
    %830 = vmatmul.bf16.gmra.mxu0 %v736
    %v831 = vpop.f32.mrf.mxu0
    %v832 = vadd.f32 %v666, %v831
    %v833 = vpop.f32.mrf.mxu0
    %v834 = vadd.f32 %v671, %v833
    %835 = vdwg.mxu0
    %836 = vmatpush.bf16.msra.mxu0 0
    %837 = vmatpush.bf16.msra.mxu0 0
    %838 = vmatpush.bf16.msra.mxu0 0
    %839 = vmatpush.bf16.msra.mxu0 0
    %840 = vmatpush.bf16.msra.mxu0 %v571
    %841 = vmatpush.bf16.msra.mxu0 %v563
    %842 = vmatpush.bf16.msra.mxu0 %v555
    %843 = vmatpush.bf16.msra.mxu0 %v547
    %844 = vmatmul.bf16.gmra.mxu0 %v715
    %v845 = vpop.f32.mrf.mxu0
    %v846 = vadd.f32 %v596, %v845
    %v847 = vpop.f32.mrf.mxu0
    %v848 = vadd.f32 %v601, %v847
    %849 = vmatmul.bf16.gmra.mxu0 %v718
    %v850 = vpop.f32.mrf.mxu0
    %v851 = vadd.f32 %v606, %v850
    %v852 = vpop.f32.mrf.mxu0
    %v853 = vadd.f32 %v611, %v852
    %854 = vmatmul.bf16.gmra.mxu0 %v721
    %v855 = vpop.f32.mrf.mxu0
    %v856 = vadd.f32 %v616, %v855
    %v857 = vpop.f32.mrf.mxu0
    %v858 = vadd.f32 %v621, %v857
    %859 = vmatmul.bf16.gmra.mxu0 %v724
    %v860 = vpop.f32.mrf.mxu0
    %v861 = vadd.f32 %v626, %v860
    %v862 = vpop.f32.mrf.mxu0
    %v863 = vadd.f32 %v631, %v862
    %864 = vmatmul.bf16.gmra.mxu0 %v727
    %v865 = vpop.f32.mrf.mxu0
    %v866 = vadd.f32 %v636, %v865
    %v867 = vpop.f32.mrf.mxu0
    %v868 = vadd.f32 %v641, %v867
    %869 = vmatmul.bf16.gmra.mxu0 %v730
    %v870 = vpop.f32.mrf.mxu0
    %v871 = vadd.f32 %v646, %v870
    %v872 = vpop.f32.mrf.mxu0
    %v873 = vadd.f32 %v651, %v872
    %874 = vmatmul.bf16.gmra.mxu0 %v733
    %v875 = vpop.f32.mrf.mxu0
    %v876 = vadd.f32 %v656, %v875
    %v877 = vpop.f32.mrf.mxu0
    %v878 = vadd.f32 %v661, %v877
    %879 = vmatmul.bf16.gmra.mxu0 %v736
    %v880 = vpop.f32.mrf.mxu0
    %v881 = vadd.f32 %v666, %v880
    %v882 = vpop.f32.mrf.mxu0
    %v883 = vadd.f32 %v671, %v882
    %884 = vdwg.mxu0
    %885 = vmatpush.bf16.msra.mxu0 0
    %886 = vmatpush.bf16.msra.mxu0 0
    %887 = vmatpush.bf16.msra.mxu0 0
    %888 = vmatpush.bf16.msra.mxu0 0
    %889 = vmatpush.bf16.msra.mxu0 %v572
    %890 = vmatpush.bf16.msra.mxu0 %v564
    %891 = vmatpush.bf16.msra.mxu0 %v556
    %892 = vmatpush.bf16.msra.mxu0 %v548
    %893 = vmatmul.bf16.gmra.mxu0 %v715
    %v894 = vpop.f32.mrf.mxu0
    %v895 = vadd.f32 %v596, %v894
    %v896 = vpop.f32.mrf.mxu0
    %v897 = vadd.f32 %v601, %v896
    %898 = vmatmul.bf16.gmra.mxu0 %v718
    %v899 = vpop.f32.mrf.mxu0
    %v900 = vadd.f32 %v606, %v899
    %v901 = vpop.f32.mrf.mxu0
    %v902 = vadd.f32 %v611, %v901
    %903 = vmatmul.bf16.gmra.mxu0 %v721
    %v904 = vpop.f32.mrf.mxu0
    %v905 = vadd.f32 %v616, %v904
    %v906 = vpop.f32.mrf.mxu0
    %v907 = vadd.f32 %v621, %v906
    %908 = vmatmul.bf16.gmra.mxu0 %v724
    %v909 = vpop.f32.mrf.mxu0
    %v910 = vadd.f32 %v626, %v909
    %v911 = vpop.f32.mrf.mxu0
    %v912 = vadd.f32 %v631, %v911
    %913 = vmatmul.bf16.gmra.mxu0 %v727
    %v914 = vpop.f32.mrf.mxu0
    %v915 = vadd.f32 %v636, %v914
    %v916 = vpop.f32.mrf.mxu0
    %v917 = vadd.f32 %v641, %v916
    %918 = vmatmul.bf16.gmra.mxu0 %v730
    %v919 = vpop.f32.mrf.mxu0
    %v920 = vadd.f32 %v646, %v919
    %v921 = vpop.f32.mrf.mxu0
    %v922 = vadd.f32 %v651, %v921
    %923 = vmatmul.bf16.gmra.mxu0 %v733
    %v924 = vpop.f32.mrf.mxu0
    %v925 = vadd.f32 %v656, %v924
    %v926 = vpop.f32.mrf.mxu0
    %v927 = vadd.f32 %v661, %v926
    %928 = vmatmul.bf16.gmra.mxu0 %v736
    %v929 = vpop.f32.mrf.mxu0
    %v930 = vadd.f32 %v666, %v929
    %v931 = vpop.f32.mrf.mxu0
    %v932 = vadd.f32 %v671, %v931
    %933 = vdwg.mxu0
    %934 = vmatpush.bf16.msra.mxu0 0
    %935 = vmatpush.bf16.msra.mxu0 0
    %936 = vmatpush.bf16.msra.mxu0 0
    %937 = vmatpush.bf16.msra.mxu0 0
    %938 = vmatpush.bf16.msra.mxu0 %v573
    %939 = vmatpush.bf16.msra.mxu0 %v565
    %940 = vmatpush.bf16.msra.mxu0 %v557
    %941 = vmatpush.bf16.msra.mxu0 %v549
    %942 = vmatmul.bf16.gmra.mxu0 %v715
    %v943 = vpop.f32.mrf.mxu0
    %v944 = vadd.f32 %v596, %v943
    %v945 = vpop.f32.mrf.mxu0
    %v946 = vadd.f32 %v601, %v945
    %947 = vmatmul.bf16.gmra.mxu0 %v718
    %v948 = vpop.f32.mrf.mxu0
    %v949 = vadd.f32 %v606, %v948
    %v950 = vpop.f32.mrf.mxu0
    %v951 = vadd.f32 %v611, %v950
    %952 = vmatmul.bf16.gmra.mxu0 %v721
    %v953 = vpop.f32.mrf.mxu0
    %v954 = vadd.f32 %v616, %v953
    %v955 = vpop.f32.mrf.mxu0
    %v956 = vadd.f32 %v621, %v955
    %957 = vmatmul.bf16.gmra.mxu0 %v724
    %v958 = vpop.f32.mrf.mxu0
    %v959 = vadd.f32 %v626, %v958
    %v960 = vpop.f32.mrf.mxu0
    %v961 = vadd.f32 %v631, %v960
    %962 = vmatmul.bf16.gmra.mxu0 %v727
    %v963 = vpop.f32.mrf.mxu0
    %v964 = vadd.f32 %v636, %v963
    %v965 = vpop.f32.mrf.mxu0
    %v966 = vadd.f32 %v641, %v965
    %967 = vmatmul.bf16.gmra.mxu0 %v730
    %v968 = vpop.f32.mrf.mxu0
    %v969 = vadd.f32 %v646, %v968
    %v970 = vpop.f32.mrf.mxu0
    %v971 = vadd.f32 %v651, %v970
    %972 = vmatmul.bf16.gmra.mxu0 %v733
    %v973 = vpop.f32.mrf.mxu0
    %v974 = vadd.f32 %v656, %v973
    %v975 = vpop.f32.mrf.mxu0
    %v976 = vadd.f32 %v661, %v975
    %977 = vmatmul.bf16.gmra.mxu0 %v736
    %v978 = vpop.f32.mrf.mxu0
    %v979 = vadd.f32 %v666, %v978
    %v980 = vpop.f32.mrf.mxu0
    %v981 = vadd.f32 %v671, %v980
    %982 = vdwg.mxu0
    %983 = vmatpush.bf16.msra.mxu0 0
    %984 = vmatpush.bf16.msra.mxu0 0
    %985 = vmatpush.bf16.msra.mxu0 0
    %986 = vmatpush.bf16.msra.mxu0 0
    %987 = vmatpush.bf16.msra.mxu0 %v574
    %988 = vmatpush.bf16.msra.mxu0 %v566
    %989 = vmatpush.bf16.msra.mxu0 %v558
    %990 = vmatpush.bf16.msra.mxu0 %v550
    %991 = vmatmul.bf16.gmra.mxu0 %v715
    %v992 = vpop.f32.mrf.mxu0
    %v993 = vadd.f32 %v596, %v992
    %v994 = vpop.f32.mrf.mxu0
    %v995 = vadd.f32 %v601, %v994
    %996 = vmatmul.bf16.gmra.mxu0 %v718
    %v997 = vpop.f32.mrf.mxu0
    %v998 = vadd.f32 %v606, %v997
    %v999 = vpop.f32.mrf.mxu0
    %v1000 = vadd.f32 %v611, %v999
    %1001 = vmatmul.bf16.gmra.mxu0 %v721
    %v1002 = vpop.f32.mrf.mxu0
    %v1003 = vadd.f32 %v616, %v1002
    %v1004 = vpop.f32.mrf.mxu0
    %v1005 = vadd.f32 %v621, %v1004
    %1006 = vmatmul.bf16.gmra.mxu0 %v724
    %v1007 = vpop.f32.mrf.mxu0
    %v1008 = vadd.f32 %v626, %v1007
    %v1009 = vpop.f32.mrf.mxu0
    %v1010 = vadd.f32 %v631, %v1009
    %1011 = vmatmul.bf16.gmra.mxu0 %v727
    %v1012 = vpop.f32.mrf.mxu0
    %v1013 = vadd.f32 %v636, %v1012
    %v1014 = vpop.f32.mrf.mxu0
    %v1015 = vadd.f32 %v641, %v1014
    %1016 = vmatmul.bf16.gmra.mxu0 %v730
    %v1017 = vpop.f32.mrf.mxu0
    %v1018 = vadd.f32 %v646, %v1017
    %v1019 = vpop.f32.mrf.mxu0
    %v1020 = vadd.f32 %v651, %v1019
    %1021 = vmatmul.bf16.gmra.mxu0 %v733
    %v1022 = vpop.f32.mrf.mxu0
    %v1023 = vadd.f32 %v656, %v1022
    %v1024 = vpop.f32.mrf.mxu0
    %v1025 = vadd.f32 %v661, %v1024
    %1026 = vmatmul.bf16.gmra.mxu0 %v736
    %v1027 = vpop.f32.mrf.mxu0
    %v1028 = vadd.f32 %v666, %v1027
    %v1029 = vpop.f32.mrf.mxu0
    %v1030 = vadd.f32 %v671, %v1029
    %1031 = vdwg.mxu0
    %1032 = vmatpush.bf16.msra.mxu0 0
    %1033 = vmatpush.bf16.msra.mxu0 0
    %1034 = vmatpush.bf16.msra.mxu0 0
    %1035 = vmatpush.bf16.msra.mxu0 0
    %1036 = vmatpush.bf16.msra.mxu0 %v575
    %1037 = vmatpush.bf16.msra.mxu0 %v567
    %1038 = vmatpush.bf16.msra.mxu0 %v559
    %1039 = vmatpush.bf16.msra.mxu0 %v551
    %1040 = vmatmul.bf16.gmra.mxu0 %v715
    %v1041 = vpop.f32.mrf.mxu0
    %v1042 = vadd.f32 %v596, %v1041
    %v1043 = vpop.f32.mrf.mxu0
    %v1044 = vadd.f32 %v601, %v1043
    %1045 = vmatmul.bf16.gmra.mxu0 %v718
    %v1046 = vpop.f32.mrf.mxu0
    %v1047 = vadd.f32 %v606, %v1046
    %v1048 = vpop.f32.mrf.mxu0
    %v1049 = vadd.f32 %v611, %v1048
    %1050 = vmatmul.bf16.gmra.mxu0 %v721
    %v1051 = vpop.f32.mrf.mxu0
    %v1052 = vadd.f32 %v616, %v1051
    %v1053 = vpop.f32.mrf.mxu0
    %v1054 = vadd.f32 %v621, %v1053
    %1055 = vmatmul.bf16.gmra.mxu0 %v724
    %v1056 = vpop.f32.mrf.mxu0
    %v1057 = vadd.f32 %v626, %v1056
    %v1058 = vpop.f32.mrf.mxu0
    %v1059 = vadd.f32 %v631, %v1058
    %1060 = vmatmul.bf16.gmra.mxu0 %v727
    %v1061 = vpop.f32.mrf.mxu0
    %v1062 = vadd.f32 %v636, %v1061
    %v1063 = vpop.f32.mrf.mxu0
    %v1064 = vadd.f32 %v641, %v1063
    %1065 = vmatmul.bf16.gmra.mxu0 %v730
    %v1066 = vpop.f32.mrf.mxu0
    %v1067 = vadd.f32 %v646, %v1066
    %v1068 = vpop.f32.mrf.mxu0
    %v1069 = vadd.f32 %v651, %v1068
    %1070 = vmatmul.bf16.gmra.mxu0 %v733
    %v1071 = vpop.f32.mrf.mxu0
    %v1072 = vadd.f32 %v656, %v1071
    %v1073 = vpop.f32.mrf.mxu0
    %v1074 = vadd.f32 %v661, %v1073
    %1075 = vmatmul.bf16.gmra.mxu0 %v736
    %v1076 = vpop.f32.mrf.mxu0
    %v1077 = vadd.f32 %v666, %v1076
    %v1078 = vpop.f32.mrf.mxu0
    %v1079 = vadd.f32 %v671, %v1078
    %1080 = vdwg.mxu0
    %1081 = vmatpush.bf16.msra.mxu0 0
    %1082 = vmatpush.bf16.msra.mxu0 0
    %1083 = vmatpush.bf16.msra.mxu0 0
    %1084 = vmatpush.bf16.msra.mxu0 0
    %1085 = vmatpush.bf16.msra.mxu0 %v576
    %1086 = vmatpush.bf16.msra.mxu0 %v568
    %1087 = vmatpush.bf16.msra.mxu0 %v560
    %1088 = vmatpush.bf16.msra.mxu0 %v552
    %1089 = vmatmul.bf16.gmra.mxu0 %v715
    %v1090 = vpop.f32.mrf.mxu0
    %v1091 = vadd.f32 %v596, %v1090
    %v1092 = vpop.f32.mrf.mxu0
    %v1093 = vadd.f32 %v601, %v1092
    %1094 = vmatmul.bf16.gmra.mxu0 %v718
    %v1095 = vpop.f32.mrf.mxu0
    %v1096 = vadd.f32 %v606, %v1095
    %v1097 = vpop.f32.mrf.mxu0
    %v1098 = vadd.f32 %v611, %v1097
    %1099 = vmatmul.bf16.gmra.mxu0 %v721
    %v1100 = vpop.f32.mrf.mxu0
    %v1101 = vadd.f32 %v616, %v1100
    %v1102 = vpop.f32.mrf.mxu0
    %v1103 = vadd.f32 %v621, %v1102
    %1104 = vmatmul.bf16.gmra.mxu0 %v724
    %v1105 = vpop.f32.mrf.mxu0
    %v1106 = vadd.f32 %v626, %v1105
    %v1107 = vpop.f32.mrf.mxu0
    %v1108 = vadd.f32 %v631, %v1107
    %1109 = vmatmul.bf16.gmra.mxu0 %v727
    %v1110 = vpop.f32.mrf.mxu0
    %v1111 = vadd.f32 %v636, %v1110
    %v1112 = vpop.f32.mrf.mxu0
    %v1113 = vadd.f32 %v641, %v1112
    %1114 = vmatmul.bf16.gmra.mxu0 %v730
    %v1115 = vpop.f32.mrf.mxu0
    %v1116 = vadd.f32 %v646, %v1115
    %v1117 = vpop.f32.mrf.mxu0
    %v1118 = vadd.f32 %v651, %v1117
    %1119 = vmatmul.bf16.gmra.mxu0 %v733
    %v1120 = vpop.f32.mrf.mxu0
    %v1121 = vadd.f32 %v656, %v1120
    %v1122 = vpop.f32.mrf.mxu0
    %v1123 = vadd.f32 %v661, %v1122
    %1124 = vmatmul.bf16.gmra.mxu0 %v736
    %v1125 = vpop.f32.mrf.mxu0
    %v1126 = vadd.f32 %v666, %v1125
    %v1127 = vpop.f32.mrf.mxu0
    %v1128 = vadd.f32 %v671, %v1127
    %1129 = vdwg.mxu0
    %v1130 = vmax.f32 %v748, 0.0
    %v1131 = vmax.f32 %v797, 0.0
    %v1132 = vmax.f32 %v846, 0.0
    %v1133 = vmax.f32 %v895, 0.0
    %v1134 = vmax.f32 %v944, 0.0
    %v1135 = vmax.f32 %v993, 0.0
    %v1136 = vmax.f32 %v1042, 0.0
    %v1137 = vmax.f32 %v1091, 0.0
    %v1138 = vmax.f32 %v750, 0.0
    %v1139 = vmax.f32 %v799, 0.0
    %v1140 = vmax.f32 %v848, 0.0
    %v1141 = vmax.f32 %v897, 0.0
    %v1142 = vmax.f32 %v946, 0.0
    %v1143 = vmax.f32 %v995, 0.0
    %v1144 = vmax.f32 %v1044, 0.0
    %v1145 = vmax.f32 %v1093, 0.0
    %v1146 = vmax.f32 %v753, 0.0
    %v1147 = vmax.f32 %v802, 0.0
    %v1148 = vmax.f32 %v851, 0.0
    %v1149 = vmax.f32 %v900, 0.0
    %v1150 = vmax.f32 %v949, 0.0
    %v1151 = vmax.f32 %v998, 0.0
    %v1152 = vmax.f32 %v1047, 0.0
    %v1153 = vmax.f32 %v1096, 0.0
    %v1154 = vmax.f32 %v755, 0.0
    %v1155 = vmax.f32 %v804, 0.0
    %v1156 = vmax.f32 %v853, 0.0
    %v1157 = vmax.f32 %v902, 0.0
    %v1158 = vmax.f32 %v951, 0.0
    %v1159 = vmax.f32 %v1000, 0.0
    %v1160 = vmax.f32 %v1049, 0.0
    %v1161 = vmax.f32 %v1098, 0.0
    %v1162 = vmax.f32 %v758, 0.0
    %v1163 = vmax.f32 %v807, 0.0
    %v1164 = vmax.f32 %v856, 0.0
    %v1165 = vmax.f32 %v905, 0.0
    %v1166 = vmax.f32 %v954, 0.0
    %v1167 = vmax.f32 %v1003, 0.0
    %v1168 = vmax.f32 %v1052, 0.0
    %v1169 = vmax.f32 %v1101, 0.0
    %v1170 = vmax.f32 %v760, 0.0
    %v1171 = vmax.f32 %v809, 0.0
    %v1172 = vmax.f32 %v858, 0.0
    %v1173 = vmax.f32 %v907, 0.0
    %v1174 = vmax.f32 %v956, 0.0
    %v1175 = vmax.f32 %v1005, 0.0
    %v1176 = vmax.f32 %v1054, 0.0
    %v1177 = vmax.f32 %v1103, 0.0
    %v1178 = vmax.f32 %v763, 0.0
    %v1179 = vmax.f32 %v812, 0.0
    %v1180 = vmax.f32 %v861, 0.0
    %v1181 = vmax.f32 %v910, 0.0
    %v1182 = vmax.f32 %v959, 0.0
    %v1183 = vmax.f32 %v1008, 0.0
    %v1184 = vmax.f32 %v1057, 0.0
    %v1185 = vmax.f32 %v1106, 0.0
    %v1186 = vmax.f32 %v765, 0.0
    %v1187 = vmax.f32 %v814, 0.0
    %v1188 = vmax.f32 %v863, 0.0
    %v1189 = vmax.f32 %v912, 0.0
    %v1190 = vmax.f32 %v961, 0.0
    %v1191 = vmax.f32 %v1010, 0.0
    %v1192 = vmax.f32 %v1059, 0.0
    %v1193 = vmax.f32 %v1108, 0.0
    %v1194 = vmax.f32 %v768, 0.0
    %v1195 = vmax.f32 %v817, 0.0
    %v1196 = vmax.f32 %v866, 0.0
    %v1197 = vmax.f32 %v915, 0.0
    %v1198 = vmax.f32 %v964, 0.0
    %v1199 = vmax.f32 %v1013, 0.0
    %v1200 = vmax.f32 %v1062, 0.0
    %v1201 = vmax.f32 %v1111, 0.0
    %v1202 = vmax.f32 %v770, 0.0
    %v1203 = vmax.f32 %v819, 0.0
    %v1204 = vmax.f32 %v868, 0.0
    %v1205 = vmax.f32 %v917, 0.0
    %v1206 = vmax.f32 %v966, 0.0
    %v1207 = vmax.f32 %v1015, 0.0
    %v1208 = vmax.f32 %v1064, 0.0
    %v1209 = vmax.f32 %v1113, 0.0
    %v1210 = vmax.f32 %v773, 0.0
    %v1211 = vmax.f32 %v822, 0.0
    %v1212 = vmax.f32 %v871, 0.0
    %v1213 = vmax.f32 %v920, 0.0
    %v1214 = vmax.f32 %v969, 0.0
    %v1215 = vmax.f32 %v1018, 0.0
    %v1216 = vmax.f32 %v1067, 0.0
    %v1217 = vmax.f32 %v1116, 0.0
    %v1218 = vmax.f32 %v775, 0.0
    %v1219 = vmax.f32 %v824, 0.0
    %v1220 = vmax.f32 %v873, 0.0
    %v1221 = vmax.f32 %v922, 0.0
    %v1222 = vmax.f32 %v971, 0.0
    %v1223 = vmax.f32 %v1020, 0.0
    %v1224 = vmax.f32 %v1069, 0.0
    %v1225 = vmax.f32 %v1118, 0.0
    %v1226 = vmax.f32 %v778, 0.0
    %v1227 = vmax.f32 %v827, 0.0
    %v1228 = vmax.f32 %v876, 0.0
    %v1229 = vmax.f32 %v925, 0.0
    %v1230 = vmax.f32 %v974, 0.0
    %v1231 = vmax.f32 %v1023, 0.0
    %v1232 = vmax.f32 %v1072, 0.0
    %v1233 = vmax.f32 %v1121, 0.0
    %v1234 = vmax.f32 %v780, 0.0
    %v1235 = vmax.f32 %v829, 0.0
    %v1236 = vmax.f32 %v878, 0.0
    %v1237 = vmax.f32 %v927, 0.0
    %v1238 = vmax.f32 %v976, 0.0
    %v1239 = vmax.f32 %v1025, 0.0
    %v1240 = vmax.f32 %v1074, 0.0
    %v1241 = vmax.f32 %v1123, 0.0
    %v1242 = vmax.f32 %v783, 0.0
    %v1243 = vmax.f32 %v832, 0.0
    %v1244 = vmax.f32 %v881, 0.0
    %v1245 = vmax.f32 %v930, 0.0
    %v1246 = vmax.f32 %v979, 0.0
    %v1247 = vmax.f32 %v1028, 0.0
    %v1248 = vmax.f32 %v1077, 0.0
    %v1249 = vmax.f32 %v1126, 0.0
    %v1250 = vmax.f32 %v785, 0.0
    %v1251 = vmax.f32 %v834, 0.0
    %v1252 = vmax.f32 %v883, 0.0
    %v1253 = vmax.f32 %v932, 0.0
    %v1254 = vmax.f32 %v981, 0.0
    %v1255 = vmax.f32 %v1030, 0.0
    %v1256 = vmax.f32 %v1079, 0.0
    %v1257 = vmax.f32 %v1128, 0.0
    %v1258 = vld [vmem:[%s5] sm:$0x1]
    %v1259 = vpack.c.bf16 %v1138, %v1130
    %v1260 = vpack.c.bf16 %v1139, %v1131
    %v1261 = vpack.c.bf16 %v1140, %v1132
    %v1262 = vpack.c.bf16 %v1141, %v1133
    %v1263 = vpack.c.bf16 %v1142, %v1134
    %v1264 = vpack.c.bf16 %v1143, %v1135
    %v1265 = vpack.c.bf16 %v1144, %v1136
    %v1266 = vpack.c.bf16 %v1145, %v1137
    %v1267 = vpack.c.bf16 %v1154, %v1146
    %v1268 = vpack.c.bf16 %v1155, %v1147
    %v1269 = vpack.c.bf16 %v1156, %v1148
    %v1270 = vpack.c.bf16 %v1157, %v1149
    %v1271 = vpack.c.bf16 %v1158, %v1150
    %v1272 = vpack.c.bf16 %v1159, %v1151
    %v1273 = vpack.c.bf16 %v1160, %v1152
    %v1274 = vpack.c.bf16 %v1161, %v1153
    %v1275 = vpack.c.bf16 %v1170, %v1162
    %v1276 = vpack.c.bf16 %v1171, %v1163
    %v1277 = vpack.c.bf16 %v1172, %v1164
    %v1278 = vpack.c.bf16 %v1173, %v1165
    %v1279 = vpack.c.bf16 %v1174, %v1166
    %v1280 = vpack.c.bf16 %v1175, %v1167
    %v1281 = vpack.c.bf16 %v1176, %v1168
    %v1282 = vpack.c.bf16 %v1177, %v1169
    %v1283 = vpack.c.bf16 %v1186, %v1178
    %v1284 = vpack.c.bf16 %v1187, %v1179
    %v1285 = vpack.c.bf16 %v1188, %v1180
    %v1286 = vpack.c.bf16 %v1189, %v1181
    %v1287 = vpack.c.bf16 %v1190, %v1182
    %v1288 = vpack.c.bf16 %v1191, %v1183
    %v1289 = vpack.c.bf16 %v1192, %v1184
    %v1290 = vpack.c.bf16 %v1193, %v1185
    %v1291 = vpack.c.bf16 %v1202, %v1194
    %v1292 = vpack.c.bf16 %v1203, %v1195
    %v1293 = vpack.c.bf16 %v1204, %v1196
    %v1294 = vpack.c.bf16 %v1205, %v1197
    %v1295 = vpack.c.bf16 %v1206, %v1198
    %v1296 = vpack.c.bf16 %v1207, %v1199
    %v1297 = vpack.c.bf16 %v1208, %v1200
    %v1298 = vpack.c.bf16 %v1209, %v1201
    %v1299 = vpack.c.bf16 %v1218, %v1210
    %v1300 = vpack.c.bf16 %v1219, %v1211
    %v1301 = vpack.c.bf16 %v1220, %v1212
    %v1302 = vpack.c.bf16 %v1221, %v1213
    %v1303 = vpack.c.bf16 %v1222, %v1214
    %v1304 = vpack.c.bf16 %v1223, %v1215
    %v1305 = vpack.c.bf16 %v1224, %v1216
    %v1306 = vpack.c.bf16 %v1225, %v1217
    %v1307 = vpack.c.bf16 %v1234, %v1226
    %v1308 = vpack.c.bf16 %v1235, %v1227
    %v1309 = vpack.c.bf16 %v1236, %v1228
    %v1310 = vpack.c.bf16 %v1237, %v1229
    %v1311 = vpack.c.bf16 %v1238, %v1230
    %v1312 = vpack.c.bf16 %v1239, %v1231
    %v1313 = vpack.c.bf16 %v1240, %v1232
    %v1314 = vpack.c.bf16 %v1241, %v1233
    %v1315 = vpack.c.bf16 %v1250, %v1242
    %v1316 = vpack.c.bf16 %v1251, %v1243
    %v1317 = vpack.c.bf16 %v1252, %v1244
    %v1318 = vpack.c.bf16 %v1253, %v1245
    %v1319 = vpack.c.bf16 %v1254, %v1246
    %v1320 = vpack.c.bf16 %v1255, %v1247
    %v1321 = vpack.c.bf16 %v1256, %v1248
    %v1322 = vpack.c.bf16 %v1257, %v1249
    %s1323 = sld [smem:[#allocation2]]
    %v1324 = vstv %s1323
    %1325 = vmatpush.bf16.msra.mxu0 %v1315
    %1326 = vmatpush.bf16.msra.mxu0 %v1307
    %1327 = vmatpush.bf16.msra.mxu0 %v1299
    %1328 = vmatpush.bf16.msra.mxu0 %v1291
    %1329 = vmatpush.bf16.msra.mxu0 %v1283
    %1330 = vmatpush.bf16.msra.mxu0 %v1275
    %1331 = vmatpush.bf16.msra.mxu0 %v1267
    %1332 = vmatpush.bf16.msra.mxu0 %v1259
    %1333 = vmatmul.bf16.gmra.mxu0 %v1258
    %v1334 = vpop.f32.mrf.mxu0
    %v1335 = vadd.f32 %v1324, %v1334
    %v1336 = vpop.f32.mrf.mxu0
    %1337 = vdwg.mxu0
    %1338 = vmatpush.bf16.msra.mxu0 %v1316
    %1339 = vmatpush.bf16.msra.mxu0 %v1308
    %1340 = vmatpush.bf16.msra.mxu0 %v1300
    %1341 = vmatpush.bf16.msra.mxu0 %v1292
    %1342 = vmatpush.bf16.msra.mxu0 %v1284
    %1343 = vmatpush.bf16.msra.mxu0 %v1276
    %1344 = vmatpush.bf16.msra.mxu0 %v1268
    %1345 = vmatpush.bf16.msra.mxu0 %v1260
    %1346 = vmatmul.bf16.gmra.mxu0 %v1258
    %v1347 = vpop.f32.mrf.mxu0
    %v1348 = vadd.f32 %v1324, %v1347
    %v1349 = vpop.f32.mrf.mxu0
    %1350 = vdwg.mxu0
    %1351 = vmatpush.bf16.msra.mxu0 %v1317
    %1352 = vmatpush.bf16.msra.mxu0 %v1309
    %1353 = vmatpush.bf16.msra.mxu0 %v1301
    %1354 = vmatpush.bf16.msra.mxu0 %v1293
    %1355 = vmatpush.bf16.msra.mxu0 %v1285
    %1356 = vmatpush.bf16.msra.mxu0 %v1277
    %1357 = vmatpush.bf16.msra.mxu0 %v1269
    %1358 = vmatpush.bf16.msra.mxu0 %v1261
    %1359 = vmatmul.bf16.gmra.mxu0 %v1258
    %v1360 = vpop.f32.mrf.mxu0
    %v1361 = vadd.f32 %v1324, %v1360
    %v1362 = vpop.f32.mrf.mxu0
    %1363 = vdwg.mxu0
    %1364 = vmatpush.bf16.msra.mxu0 %v1318
    %1365 = vmatpush.bf16.msra.mxu0 %v1310
    %1366 = vmatpush.bf16.msra.mxu0 %v1302
    %1367 = vmatpush.bf16.msra.mxu0 %v1294
    %1368 = vmatpush.bf16.msra.mxu0 %v1286
    %1369 = vmatpush.bf16.msra.mxu0 %v1278
    %1370 = vmatpush.bf16.msra.mxu0 %v1270
    %1371 = vmatpush.bf16.msra.mxu0 %v1262
    %1372 = vmatmul.bf16.gmra.mxu0 %v1258
    %v1373 = vpop.f32.mrf.mxu0
    %v1374 = vadd.f32 %v1324, %v1373
    %v1375 = vpop.f32.mrf.mxu0
    %1376 = vdwg.mxu0
    %1377 = vmatpush.bf16.msra.mxu0 %v1319
    %1378 = vmatpush.bf16.msra.mxu0 %v1311
    %1379 = vmatpush.bf16.msra.mxu0 %v1303
    %1380 = vmatpush.bf16.msra.mxu0 %v1295
    %1381 = vmatpush.bf16.msra.mxu0 %v1287
    %1382 = vmatpush.bf16.msra.mxu0 %v1279
    %1383 = vmatpush.bf16.msra.mxu0 %v1271
    %1384 = vmatpush.bf16.msra.mxu0 %v1263
    %1385 = vmatmul.bf16.gmra.mxu0 %v1258
    %v1386 = vpop.f32.mrf.mxu0
    %v1387 = vadd.f32 %v1324, %v1386
    %v1388 = vpop.f32.mrf.mxu0
    %1389 = vdwg.mxu0
    %1390 = vmatpush.bf16.msra.mxu0 %v1320
    %1391 = vmatpush.bf16.msra.mxu0 %v1312
    %1392 = vmatpush.bf16.msra.mxu0 %v1304
    %1393 = vmatpush.bf16.msra.mxu0 %v1296
    %1394 = vmatpush.bf16.msra.mxu0 %v1288
    %1395 = vmatpush.bf16.msra.mxu0 %v1280
    %1396 = vmatpush.bf16.msra.mxu0 %v1272
    %1397 = vmatpush.bf16.msra.mxu0 %v1264
    %1398 = vmatmul.bf16.gmra.mxu0 %v1258
    %v1399 = vpop.f32.mrf.mxu0
    %v1400 = vadd.f32 %v1324, %v1399
    %v1401 = vpop.f32.mrf.mxu0
    %1402 = vdwg.mxu0
    %1403 = vmatpush.bf16.msra.mxu0 %v1321
    %1404 = vmatpush.bf16.msra.mxu0 %v1313
    %1405 = vmatpush.bf16.msra.mxu0 %v1305
    %1406 = vmatpush.bf16.msra.mxu0 %v1297
    %1407 = vmatpush.bf16.msra.mxu0 %v1289
    %1408 = vmatpush.bf16.msra.mxu0 %v1281
    %1409 = vmatpush.bf16.msra.mxu0 %v1273
    %1410 = vmatpush.bf16.msra.mxu0 %v1265
    %1411 = vmatmul.bf16.gmra.mxu0 %v1258
    %v1412 = vpop.f32.mrf.mxu0
    %v1413 = vadd.f32 %v1324, %v1412
    %v1414 = vpop.f32.mrf.mxu0
    %1415 = vdwg.mxu0
    %1416 = vmatpush.bf16.msra.mxu0 %v1322
    %1417 = vmatpush.bf16.msra.mxu0 %v1314
    %1418 = vmatpush.bf16.msra.mxu0 %v1306
    %1419 = vmatpush.bf16.msra.mxu0 %v1298
    %1420 = vmatpush.bf16.msra.mxu0 %v1290
    %1421 = vmatpush.bf16.msra.mxu0 %v1282
    %1422 = vmatpush.bf16.msra.mxu0 %v1274
    %1423 = vmatpush.bf16.msra.mxu0 %v1266
    %1424 = vmatmul.bf16.gmra.mxu0 %v1258
    %v1425 = vpop.f32.mrf.mxu0
    %v1426 = vadd.f32 %v1324, %v1425
    %v1427 = vpop.f32.mrf.mxu0
    %1428 = vdwg.mxu0
    %v1437 = vrot.slane %v1348, 7
    %v1438 = vrot.slane %v1361, 6
    %v1439 = vrot.slane %v1374, 5
    %v1440 = vrot.slane %v1387, 4
    %v1441 = vrot.slane %v1400, 3
    %v1442 = vrot.slane %v1413, 2
    %v1443 = vrot.slane %v1426, 1
    %vm1444 = vcmask 1040384
    %v1445 = vsel %vm1444, %v1335, %v1437
    %vm1446 = vcmask 1042434
    %v1447 = vsel %vm1446, %v1438, %v1439
    %vm1448 = vcmask 1041408
    %v1449 = vsel %vm1448, %v1445, %v1447
    %vm1450 = vcmask 1044484
    %v1451 = vsel %vm1450, %v1440, %v1441
    %vm1452 = vcmask 1046534
    %v1453 = vsel %vm1452, %v1442, %v1443
    %vm1454 = vcmask 1045508
    %v1455 = vsel %vm1454, %v1451, %v1453
    %vm1456 = vcmask 1043456
    %v1457 = vsel %vm1456, %v1449, %v1455
    %1459 = vst [vmem:[#allocation3] sm:$0xff] %v1457
    // Predicated region
    $region30: #{tpu_custom_call.1} parent=1 // pred_check
      _
    $region31: #{tpu_custom_call.1} parent=1 // pred_check_branch
      %1461 = sbr.rel (0) target = $region33
    $region32: #{tpu_custom_call.1} parent=1 // pred_region
      %1463 = vsyncadd [#allocation4], 0
      %s1465 = sshll.u32 [#allocation3], 4
      %s1466 = int_to_ptr.vmem [resolvable:$true] %s1465
      %s1467 = sshll.u32 %s7, 4
      %s1468 = int_to_ptr.hbm [resolvable:$true] %s1467
      %1470 = dma.vmem_to_hbm [thread:$0]  %s1466, 128, %s1468, [#allocation4]
    $region33: #{tpu_custom_call.1} parent=1 // pred_fallthru
      _
    // Predicated region
    $region34: #{tpu_custom_call.1} parent=1 // pred_check
      _
    $region35: #{tpu_custom_call.1} parent=1 // pred_check_branch
      %1472 = sbr.rel (0) target = $region37
    $region36: #{tpu_custom_call.1} parent=1 // pred_region
      %1474 = dma.done [#allocation4], 128
    $region37: #{tpu_custom_call.1} parent=1 // pred_fallthru
      _
    %1475 = vsyncpa [#allocation4], 1

</llo_original>
